<compile_context>
chip_gen: v6e
topology: v6e:2x2x1
jax: 0.10.0
libtpu: 0.0.40
codegen_flags: <defaults>
</compile_context>

<pallas_src>
import functools

import jax
import jax.numpy as jnp
import numpy as np
from jax import lax
from jax.experimental import pallas as pl
from jax.experimental.pallas import tpu as pltpu


# ----------------------------------------------------------------------------
# Kernel
# ----------------------------------------------------------------------------
def mps_kernel(x_ref, a_ref, o_ref, *, group, phys, sg_blk, whole_a):
    """One grid step = a block of consecutive site-GROUP contractions.

    x_ref: (sg_blk, group*phys, Bb)   physical features, batch on lanes
    a_ref: (n_groups, Wl, K) if whole_a else (sg_blk, Wl, K)
           grouped slabs, slab[r, p0*P^{G-1}*Wl + ... + p_{G-1}*Wl + l]
    o_ref: (Wl, Bb)                   running left vector == output block
                                      (constant block index over the site axis
                                      keeps it VMEM-resident across the chain)
    """
    wl = o_ref.shape[0]

    @pl.when(pl.program_id(1) == 0)
    def _init():
        # left_vector = e_0  (== torch.ones(B, 1) under the zero padding)
        row = lax.broadcasted_iota(jnp.int32, o_ref.shape, 0)
        o_ref[...] = jnp.where(row == 0, 1.0, 0.0).astype(o_ref.dtype)

    # When the whole A chain is VMEM-resident, index it with the absolute
    # group position; otherwise the block already starts at the current group.
    a_base = pl.program_id(1) * sg_blk if whole_a else 0

    def group_step(g, left):
        x_g = x_ref[g]                       # (group*phys, Bb)
        a_g = a_ref[a_base + g]              # (Wl, K)
        # outer[(p0..p_{G-1}, l), b] = prod_j x_j[p_j, b] * left[l, b]
        # built with G broadcast-multiplies on the VPU; every merge keeps the
        # sublane dim a multiple of 8 (k starts at Wl = 8n), so reshapes are
        # tile aligned.
        outer = left                         # (Wl, Bb)
        k = wl
        for j in range(group - 1, -1, -1):
            x_j = x_g[j * phys:(j + 1) * phys, :]                # (P, Bb)
            outer = (x_j[:, None, :] * outer[None, :, :]).reshape(phys * k, -1)
            k *= phys
        # single fused MXU contraction over (p0..p_{G-1}, l): K = P^G * Wl
        return jnp.dot(a_g, outer, preferred_element_type=jnp.float32)

    left = o_ref[...]
    unroll = sg_blk if sg_blk <= 16 else 8   # bounded unroll: vreg pressure
    left = lax.fori_loop(0, sg_blk, group_step, left, unroll=unroll)
    o_ref[...] = left


# ----------------------------------------------------------------------------
# Planning helpers
# ----------------------------------------------------------------------------
def _round_up(x, m):
    return ((x + m - 1) // m) * m


def _pick_group_size(num_sites, phys_dim, wl, k_target=128, k_cap=2048):
    """Smallest group size G (dividing num_sites) with P^G*Wl >= 128 lanes."""
    best = 1
    for g in range(1, 5):
        if num_sites % g != 0:
            continue
        k = (phys_dim ** g) * wl
        if k > k_cap:
            break
        best = g
        if k >= k_target:
            break
    return best


def _pick_batch_block(b_pad):
    """b_pad is a multiple of 128; prefer >= 2 blocks so the 'parallel' batch
    axis can be sharded across both v7x TensorCores."""
    for cand in (512, 384, 256, 128):
        if b_pad % cand == 0 and b_pad // cand >= 2:
            return cand
    return min(b_pad, 128)


def _plan_blocks(n_groups, gp, wl, k, b_pad, itemsize=4):
    """Pick (b_blk, sg_blk, whole_a, vmem_limit_bytes) from the chip's VMEM."""
    try:
        # 64 MiB per TC on v7x, 128 MiB on v5e/v6e.
        cap = int(pltpu.get_tpu_info().vmem_capacity_bytes)
    except Exception:
        cap = 64 << 20                       # conservative (v7x) fallback
    budget = int(cap * 0.40)                 # live, double-buffered blocks
    vmem_limit = min(int(cap * 0.75), 100 << 20)

    b_blk = _pick_batch_block(b_pad)

    gp_pad = _round_up(gp, 8)                # sublane padding of the x tile
    k_pad = _round_up(k, 128)                # lane padding of the A slab
    x_bytes = gp_pad * b_blk * itemsize      # per group, per buffer
    a_bytes = wl * k_pad * itemsize          # per group, per buffer
    out_bytes = 2 * wl * b_blk * itemsize    # carry / output block

    # Keep the entire A chain VMEM-resident (constant index_map => fetched
    # from HBM exactly once for the whole kernel) whenever it fits next to a
    # minimal x pipeline.
    whole_a = 2 * n_groups * a_bytes + 2 * x_bytes + out_bytes <= budget

    def fits(sg):
        a_cost = 2 * n_groups * a_bytes if whole_a else 2 * sg * a_bytes
        return a_cost + 2 * sg * x_bytes + out_bytes <= budget

    sg_blk = 1
    for cand in range(1, n_groups + 1):      # largest divisor that fits
        if n_groups % cand == 0 and fits(cand):
            sg_blk = cand
    return b_blk, sg_blk, whole_a, vmem_limit


# ----------------------------------------------------------------------------
# Parameter preparation (host side)
# ----------------------------------------------------------------------------
def init_mps_params(key, num_sites, phys_dim, bond_dim, num_classes):
    """Deterministic replica of the module's __init__ (randn + QR)."""
    tensors = []
    keys = jax.random.split(key, num_sites)
    for i in range(num_sites):
        if i == 0:
            shape = (1, phys_dim, bond_dim)
        elif i == num_sites - 1:
            shape = (bond_dim, phys_dim, num_classes)
        else:
            shape = (bond_dim, phys_dim, bond_dim)
        t = jax.random.normal(keys[i], shape, dtype=jnp.float32)
        if i < num_sites - 1:
            m = t.reshape(-1, shape[-1])
            q, _ = jnp.linalg.qr(m)          # reduced QR, same as torch default
            t = q.reshape(shape)
        tensors.append(t)
    return tensors


def stack_and_pad(tensors, phys_dim, bond_dim, num_classes, group):
    """Pre-contract groups of `group` sites into (n_groups, Wl, P^G*Wl) slabs.

    slab[gi, r, p0*P^{G-1}*Wl + ... + p_{G-1}*Wl + l] =
        sum over intermediate bonds of A_{gi*G}[l,p0,.] ... A_{gi*G+G-1}[.,p_{G-1},r]
    Bond dims are zero-padded to Wl = round_up(max(bond_dim, num_classes), 8).
    Done in float64 numpy so parameter prep adds no extra rounding error.
    """
    W = max(bond_dim, num_classes, 1)
    Wl = _round_up(W, 8)
    S = len(tensors)
    assert S % group == 0
    padded = []
    for t in tensors:
        tn = np.asarray(t, dtype=np.float64)
        l, _, r = tn.shape
        tp = np.zeros((Wl, phys_dim, Wl), np.float64)
        tp[:l, :, :r] = tn
        padded.append(tp)
    slabs = []
    for gi in range(S // group):
        M = padded[gi * group]                                   # (l, p0, m)
        for t in padded[gi * group + 1:(gi + 1) * group]:
            M = np.tensordot(M, t, axes=([-1], [0]))             # ... append (p_j, r)
        # M: (l, p0, ..., p_{G-1}, r)  ->  (r, p0, ..., p_{G-1}, l)
        perm = (M.ndim - 1,) + tuple(range(1, M.ndim - 1)) + (0,)
        slabs.append(np.transpose(M, perm).reshape(Wl, -1))
    return jnp.asarray(np.stack(slabs, 0), dtype=jnp.float32)    # (n_groups, Wl, K)


# ----------------------------------------------------------------------------
# Forward
# ----------------------------------------------------------------------------
@functools.partial(jax.jit, static_argnames=("num_classes",))
def mps_forward(x_bsp, A_stacked, num_classes):
    """x_bsp: (batch, num_sites, phys_dim) f32 -> (batch,) or (batch, num_classes)."""
    B, S, P = x_bsp.shape
    n_groups, Wl, K = A_stacked.shape
    group = S // n_groups
    GP = group * P

    # Batch padding: lane axis must be a multiple of 128; >= 256 guarantees at
    # least two batch blocks for the v7x second TensorCore. Zero filled.
    B_pad = max(_round_up(B, 128), 256)
    x_pad = jnp.pad(x_bsp, ((0, B_pad - B), (0, 0), (0, 0)))

    # Lane-dense + group-dense re-layout: (B,S,P) -> (S/G, G*P, B_pad).
    x_spb = jnp.transpose(x_pad, (1, 2, 0)).reshape(n_groups, GP, B_pad)

    b_blk, sg_blk, whole_a, vmem_limit = _plan_blocks(n_groups, GP, Wl, K, B_pad)

    if whole_a:
        # Constant index_map: A is DMA'd from HBM once and stays VMEM-resident.
        a_spec = pl.BlockSpec((n_groups, Wl, K), lambda b, s: (0, 0, 0))
    else:
        a_spec = pl.BlockSpec((sg_blk, Wl, K), lambda b, s: (s, 0, 0))

    kernel = functools.partial(mps_kernel, group=group, phys=P,
                               sg_blk=sg_blk, whole_a=whole_a)

    out = pl.pallas_call(
        kernel,
        out_shape=jax.ShapeDtypeStruct((Wl, B_pad), jnp.float32),
        grid=(B_pad // b_blk, n_groups // sg_blk),
        in_specs=[
            pl.BlockSpec((sg_blk, GP, b_blk), lambda b, s: (s, 0, b)),   # x groups
            a_spec,                                                       # A slabs
        ],
        out_specs=pl.BlockSpec((Wl, b_blk), lambda b, s: (0, b)),
        compiler_params=pltpu.CompilerParams(
            # batch blocks independent (megacore-shardable on v7x); the site
            # chain is the sequential reduction.
            dimension_semantics=("parallel", "arbitrary"),
            vmem_limit_bytes=vmem_limit),
    )(x_spb, A_stacked)

    if num_classes == 1:
        return out[0, :B]
    return out[:num_classes, :B].T


def mps_reference(x_bsp, tensors, num_classes):
    """Exact float64 numpy reference mirroring the PyTorch forward."""
    x = np.asarray(x_bsp, dtype=np.float64)
    B = x.shape[0]
    left = np.ones((B, 1), np.float64)
    for i, A in enumerate(tensors):
        Ad = np.asarray(A, dtype=np.float64)
        tmp = np.einsum('bl,lpr->bpr', left, Ad)
        left = np.einsum('bpr,bp->br', tmp, x[:, i, :])
    return left[:, 0] if num_classes == 1 else left


if __name__ == "__main__":
    # Small shapes consistent with the module. The PyTorch __init__'s QR
    # reshape requires phys_dim >= bond_dim for site 0, so pick them equal.
    batch = 2
    num_sites = 8
    phys_dim = 4
    bond_dim = 4
    num_classes = 1

    key = jax.random.PRNGKey(0)
    k_param, k_x = jax.random.split(key)

    tensors = init_mps_params(k_param, num_sites, phys_dim, bond_dim, num_classes)

    Wl = _round_up(max(bond_dim, num_classes, 1), 8)
    group = _pick_group_size(num_sites, phys_dim, Wl)      # G=2 -> K=128 here
    A_stacked = stack_and_pad(tensors, phys_dim, bond_dim, num_classes, group)

    x = jax.random.normal(k_x, (batch, num_sites, phys_dim), dtype=jnp.float32)

    out = mps_forward(x, A_stacked, num_classes)
    out = jax.block_until_ready(out)

    ref = mps_reference(x, tensors, num_classes)
    np.testing.assert_allclose(np.asarray(out), ref, rtol=5e-4, atol=1e-5)

    # TODO(synk): normalize() (QR re-canonicalization) is a host-side parameter
    # transform, not a kernel; tensors_override is handled by rebuilding
    # A_stacked (stack_and_pad) and passing it to mps_forward.
    print("KERNEL_OK")
</pallas_src>

<mosaic_0001>
module attributes {stable_mosaic.version = 11 : i64} {
  func.func @mps_kernel(%arg0: i32, %arg1: i32, %arg2: memref<4x8x128xf32, #tpu.memory_space<vmem>>, %arg3: memref<4x8x128xf32, #tpu.memory_space<vmem>>, %arg4: memref<8x128xf32, #tpu.memory_space<vmem>>) attributes {dimension_semantics = [#tpu.dimension_semantics<parallel>, #tpu.dimension_semantics<arbitrary>], iteration_bounds = array<i64: 2, 1>, scalar_prefetch = 0 : i64, scratch_operands = 0 : i64, tpu.core_type = #tpu.core_type<tc>, window_params = [{transform_indices = @transform_0, window_bounds = array<i64: 4, 8, 128>}, {pipeline_mode = #tpu.pipeline_mode<synchronous>, transform_indices = @transform_1, window_bounds = array<i64: 4, 8, 128>}, {transform_indices = @transform_2, window_bounds = array<i64: 8, 128>}]} {
    %c0_i32 = arith.constant 0 : i32
    %0 = arith.cmpi eq, %arg1, %c0_i32 : i32
    %1 = arith.extui %0 : i1 to i32
    %c0_i32_0 = arith.constant 0 : i32
    %2 = arith.cmpi ne, %1, %c0_i32_0 : i32
    scf.if %2 {
      %94 = tpu.iota {dimensions = array<i32: 0>} : vector<8x128xi32>
      %c0_i32_25 = arith.constant 0 : i32
      %95 = vector.broadcast %c0_i32_25 : i32 to vector<8x128xi32>
      %96 = arith.cmpi eq, %94, %95 : vector<8x128xi32>
      %cst_26 = arith.constant 1.000000e+00 : f32
      %cst_27 = arith.constant 0.000000e+00 : f32
      %97 = vector.broadcast %cst_26 : f32 to vector<8x128xf32>
      %98 = vector.broadcast %cst_27 : f32 to vector<8x128xf32>
      %99 = arith.select %96, %97, %98 : vector<8x128xi1>, vector<8x128xf32>
      %c0_28 = arith.constant 0 : index
      %c0_29 = arith.constant 0 : index
      %100 = vector.load %arg4[%c0_28, %c0_29] : memref<8x128xf32, #tpu.memory_space<vmem>>, vector<8x128xf32>
      tpu.vector_store %arg4[%c0_28, %c0_29], %99 {strides = array<i32>} : memref<8x128xf32, #tpu.memory_space<vmem>>, vector<8x128xf32>,
    } else {
    }
    %c4_i32 = arith.constant 4 : i32
    %3 = arith.muli %arg1, %c4_i32 : i32
    %c0 = arith.constant 0 : index
    %c0_1 = arith.constant 0 : index
    %4 = vector.load %arg4[%c0, %c0_1] : memref<8x128xf32, #tpu.memory_space<vmem>>, vector<8x128xf32>
    %c0_i32_2 = arith.constant 0 : i32
    %5 = arith.index_cast %c0_i32_2 : i32 to index
    %c0_3 = arith.constant 0 : index
    %c0_4 = arith.constant 0 : index
    %6 = vector.load %arg2[%5, %c0_3, %c0_4] : memref<4x8x128xf32, #tpu.memory_space<vmem>>, vector<1x8x128xf32>
    %7 = vector.shape_cast %6 : vector<1x8x128xf32> to vector<8x128xf32>
    %8 = arith.addi %3, %c0_i32_2 : i32
    %9 = arith.index_cast %8 : i32 to index
    %c0_5 = arith.constant 0 : index
    %c0_6 = arith.constant 0 : index
    %10 = vector.load %arg3[%9, %c0_5, %c0_6] : memref<4x8x128xf32, #tpu.memory_space<vmem>>, vector<1x8x128xf32>
    %11 = vector.shape_cast %10 : vector<1x8x128xf32> to vector<8x128xf32>
    %12 = vector.extract_strided_slice %7 {offsets = [4, 0], sizes = [4, 128], strides = [1, 1]} : vector<8x128xf32> to vector<4x128xf32>
    %13 = vector.shape_cast %12 : vector<4x128xf32> to vector<4x1x128xf32>
    %14 = vector.shape_cast %4 : vector<8x128xf32> to vector<1x8x128xf32>
    %15 = vector.broadcast %13 : vector<4x1x128xf32> to vector<4x8x128xf32>
    %16 = vector.broadcast %14 : vector<1x8x128xf32> to vector<4x8x128xf32>
    %17 = arith.mulf %15, %16 : vector<4x8x128xf32>
    %18 = vector.shape_cast %17 : vector<4x8x128xf32> to vector<32x128xf32>
    %19 = vector.extract_strided_slice %7 {offsets = [0, 0], sizes = [4, 128], strides = [1, 1]} : vector<8x128xf32> to vector<4x128xf32>
    %20 = vector.shape_cast %19 : vector<4x128xf32> to vector<4x1x128xf32>
    %21 = vector.shape_cast %18 : vector<32x128xf32> to vector<1x32x128xf32>
    %22 = vector.broadcast %20 : vector<4x1x128xf32> to vector<4x32x128xf32>
    %23 = vector.broadcast %21 : vector<1x32x128xf32> to vector<4x32x128xf32>
    %24 = arith.mulf %22, %23 : vector<4x32x128xf32>
    %25 = vector.shape_cast %24 : vector<4x32x128xf32> to vector<128x128xf32>
    %cst = arith.constant dense<0.000000e+00> : vector<8x128xf32>
    %26 = tpu.matmul %11, %25, %cst {dimension_numbers = #tpu.dot_dimension_numbers<[1], [0], [0], [1], [0, 0, 1, 1], [], []>} : vector<8x128xf32>, vector<128x128xf32>, vector<8x128xf32> -> vector<8x128xf32>
    %c1_i32 = arith.constant 1 : i32
    %27 = arith.index_cast %c1_i32 : i32 to index
    %c0_7 = arith.constant 0 : index
    %c0_8 = arith.constant 0 : index
    %28 = vector.load %arg2[%27, %c0_7, %c0_8] : memref<4x8x128xf32, #tpu.memory_space<vmem>>, vector<1x8x128xf32>
    %29 = vector.shape_cast %28 : vector<1x8x128xf32> to vector<8x128xf32>
    %30 = arith.addi %3, %c1_i32 : i32
    %31 = arith.index_cast %30 : i32 to index
    %c0_9 = arith.constant 0 : index
    %c0_10 = arith.constant 0 : index
    %32 = vector.load %arg3[%31, %c0_9, %c0_10] : memref<4x8x128xf32, #tpu.memory_space<vmem>>, vector<1x8x128xf32>
    %33 = vector.shape_cast %32 : vector<1x8x128xf32> to vector<8x128xf32>
    %34 = vector.extract_strided_slice %29 {offsets = [4, 0], sizes = [4, 128], strides = [1, 1]} : vector<8x128xf32> to vector<4x128xf32>
    %35 = vector.shape_cast %34 : vector<4x128xf32> to vector<4x1x128xf32>
    %36 = vector.shape_cast %26 : vector<8x128xf32> to vector<1x8x128xf32>
    %37 = vector.broadcast %35 : vector<4x1x128xf32> to vector<4x8x128xf32>
    %38 = vector.broadcast %36 : vector<1x8x128xf32> to vector<4x8x128xf32>
    %39 = arith.mulf %37, %38 : vector<4x8x128xf32>
    %40 = vector.shape_cast %39 : vector<4x8x128xf32> to vector<32x128xf32>
    %41 = vector.extract_strided_slice %29 {offsets = [0, 0], sizes = [4, 128], strides = [1, 1]} : vector<8x128xf32> to vector<4x128xf32>
    %42 = vector.shape_cast %41 : vector<4x128xf32> to vector<4x1x128xf32>
    %43 = vector.shape_cast %40 : vector<32x128xf32> to vector<1x32x128xf32>
    %44 = vector.broadcast %42 : vector<4x1x128xf32> to vector<4x32x128xf32>
    %45 = vector.broadcast %43 : vector<1x32x128xf32> to vector<4x32x128xf32>
    %46 = arith.mulf %44, %45 : vector<4x32x128xf32>
    %47 = vector.shape_cast %46 : vector<4x32x128xf32> to vector<128x128xf32>
    %cst_11 = arith.constant dense<0.000000e+00> : vector<8x128xf32>
    %48 = tpu.matmul %33, %47, %cst_11 {dimension_numbers = #tpu.dot_dimension_numbers<[1], [0], [0], [1], [0, 0, 1, 1], [], []>} : vector<8x128xf32>, vector<128x128xf32>, vector<8x128xf32> -> vector<8x128xf32>
    %c2_i32 = arith.constant 2 : i32
    %49 = arith.index_cast %c2_i32 : i32 to index
    %c0_12 = arith.constant 0 : index
    %c0_13 = arith.constant 0 : index
    %50 = vector.load %arg2[%49, %c0_12, %c0_13] : memref<4x8x128xf32, #tpu.memory_space<vmem>>, vector<1x8x128xf32>
    %51 = vector.shape_cast %50 : vector<1x8x128xf32> to vector<8x128xf32>
    %52 = arith.addi %3, %c2_i32 : i32
    %53 = arith.index_cast %52 : i32 to index
    %c0_14 = arith.constant 0 : index
    %c0_15 = arith.constant 0 : index
    %54 = vector.load %arg3[%53, %c0_14, %c0_15] : memref<4x8x128xf32, #tpu.memory_space<vmem>>, vector<1x8x128xf32>
    %55 = vector.shape_cast %54 : vector<1x8x128xf32> to vector<8x128xf32>
    %56 = vector.extract_strided_slice %51 {offsets = [4, 0], sizes = [4, 128], strides = [1, 1]} : vector<8x128xf32> to vector<4x128xf32>
    %57 = vector.shape_cast %56 : vector<4x128xf32> to vector<4x1x128xf32>
    %58 = vector.shape_cast %48 : vector<8x128xf32> to vector<1x8x128xf32>
    %59 = vector.broadcast %57 : vector<4x1x128xf32> to vector<4x8x128xf32>
    %60 = vector.broadcast %58 : vector<1x8x128xf32> to vector<4x8x128xf32>
    %61 = arith.mulf %59, %60 : vector<4x8x128xf32>
    %62 = vector.shape_cast %61 : vector<4x8x128xf32> to vector<32x128xf32>
    %63 = vector.extract_strided_slice %51 {offsets = [0, 0], sizes = [4, 128], strides = [1, 1]} : vector<8x128xf32> to vector<4x128xf32>
    %64 = vector.shape_cast %63 : vector<4x128xf32> to vector<4x1x128xf32>
    %65 = vector.shape_cast %62 : vector<32x128xf32> to vector<1x32x128xf32>
    %66 = vector.broadcast %64 : vector<4x1x128xf32> to vector<4x32x128xf32>
    %67 = vector.broadcast %65 : vector<1x32x128xf32> to vector<4x32x128xf32>
    %68 = arith.mulf %66, %67 : vector<4x32x128xf32>
    %69 = vector.shape_cast %68 : vector<4x32x128xf32> to vector<128x128xf32>
    %cst_16 = arith.constant dense<0.000000e+00> : vector<8x128xf32>
    %70 = tpu.matmul %55, %69, %cst_16 {dimension_numbers = #tpu.dot_dimension_numbers<[1], [0], [0], [1], [0, 0, 1, 1], [], []>} : vector<8x128xf32>, vector<128x128xf32>, vector<8x128xf32> -> vector<8x128xf32>
    %c3_i32 = arith.constant 3 : i32
    %71 = arith.index_cast %c3_i32 : i32 to index
    %c0_17 = arith.constant 0 : index
    %c0_18 = arith.constant 0 : index
    %72 = vector.load %arg2[%71, %c0_17, %c0_18] : memref<4x8x128xf32, #tpu.memory_space<vmem>>, vector<1x8x128xf32>
    %73 = vector.shape_cast %72 : vector<1x8x128xf32> to vector<8x128xf32>
    %74 = arith.addi %3, %c3_i32 : i32
    %75 = arith.index_cast %74 : i32 to index
    %c0_19 = arith.constant 0 : index
    %c0_20 = arith.constant 0 : index
    %76 = vector.load %arg3[%75, %c0_19, %c0_20] : memref<4x8x128xf32, #tpu.memory_space<vmem>>, vector<1x8x128xf32>
    %77 = vector.shape_cast %76 : vector<1x8x128xf32> to vector<8x128xf32>
    %78 = vector.extract_strided_slice %73 {offsets = [4, 0], sizes = [4, 128], strides = [1, 1]} : vector<8x128xf32> to vector<4x128xf32>
    %79 = vector.shape_cast %78 : vector<4x128xf32> to vector<4x1x128xf32>
    %80 = vector.shape_cast %70 : vector<8x128xf32> to vector<1x8x128xf32>
    %81 = vector.broadcast %79 : vector<4x1x128xf32> to vector<4x8x128xf32>
    %82 = vector.broadcast %80 : vector<1x8x128xf32> to vector<4x8x128xf32>
    %83 = arith.mulf %81, %82 : vector<4x8x128xf32>
    %84 = vector.shape_cast %83 : vector<4x8x128xf32> to vector<32x128xf32>
    %85 = vector.extract_strided_slice %73 {offsets = [0, 0], sizes = [4, 128], strides = [1, 1]} : vector<8x128xf32> to vector<4x128xf32>
    %86 = vector.shape_cast %85 : vector<4x128xf32> to vector<4x1x128xf32>
    %87 = vector.shape_cast %84 : vector<32x128xf32> to vector<1x32x128xf32>
    %88 = vector.broadcast %86 : vector<4x1x128xf32> to vector<4x32x128xf32>
    %89 = vector.broadcast %87 : vector<1x32x128xf32> to vector<4x32x128xf32>
    %90 = arith.mulf %88, %89 : vector<4x32x128xf32>
    %91 = vector.shape_cast %90 : vector<4x32x128xf32> to vector<128x128xf32>
    %cst_21 = arith.constant dense<0.000000e+00> : vector<8x128xf32>
    %92 = tpu.matmul %77, %91, %cst_21 {dimension_numbers = #tpu.dot_dimension_numbers<[1], [0], [0], [1], [0, 0, 1, 1], [], []>} : vector<8x128xf32>, vector<128x128xf32>, vector<8x128xf32> -> vector<8x128xf32>
    %c4_i32_22 = arith.constant 4 : i32
    %c0_23 = arith.constant 0 : index
    %c0_24 = arith.constant 0 : index
    %93 = vector.load %arg4[%c0_23, %c0_24] : memref<8x128xf32, #tpu.memory_space<vmem>>, vector<8x128xf32>
    tpu.vector_store %arg4[%c0_23, %c0_24], %92 {strides = array<i32>} : memref<8x128xf32, #tpu.memory_space<vmem>>, vector<8x128xf32>,
    return
  }
  func.func @transform_0(%arg0: i32, %arg1: i32) -> (i32, i32, i32) {
    %c0_i32 = arith.constant 0 : i32
    %c0_i32_0 = arith.constant 0 : i32
    return %arg1, %c0_i32, %arg0 : i32, i32, i32
  }
  func.func @transform_1(%arg0: i32, %arg1: i32) -> (i32, i32, i32) {
    %c0_i32 = arith.constant 0 : i32
    %c0_i32_0 = arith.constant 0 : i32
    %c0_i32_1 = arith.constant 0 : i32
    %c0_i32_2 = arith.constant 0 : i32
    return %c0_i32, %c0_i32_0, %c0_i32_1 : i32, i32, i32
  }
  func.func @transform_2(%arg0: i32, %arg1: i32) -> (i32, i32) {
    %c0_i32 = arith.constant 0 : i32
    %c0_i32_0 = arith.constant 0 : i32
    return %c0_i32, %arg0 : i32, i32
  }
}

</mosaic_0001>

<llo_original>
// kernel: mps_forward.1
$region0: #{mps_forward.1}
  #allocation0 [shape = 'u32[]', space=smem, size = 0x4, offset = 0x4, fixed_abs, tag = 'smem constant byte address 0x4 - core index']
  #allocation1 [shape = 'u32[144,128]{1,0:T(1,128)}', space=vmem, size = 0x12000, scoped, tag = 'internal scratch']
  %s0 = inlined_call_operand.vmem [shape: f32[4,8,256], index: 0, kind: input, shape index: {}]
  %s1 = inlined_call_operand.vmem [shape: f32[4,8,128], index: 1, kind: input, shape index: {}]
  %s2 = inlined_call_operand.vmem [shape: f32[8,256], index: 2, kind: output, shape index: {}]
  %s3 = sld [smem:[#allocation0]]
  $region83: #{mps_forward.1} parent=0
    _
  %s5 = ssub.s32 1, %s3
  %s6 = scalar_select 0, %s5, %s3
  $region1: #{mps_forward.1} parent=0
    #allocation2 [shape = 'u8[32768]{0}', space=vmem, size = 0x8000, scoped, tag = 'input window, operand 0']
    loop: start=0, step=1, limit=4
    $region2: #{mps_forward.1} parent=1 // loop_pre_header
      _
    $region3: #{mps_forward.1} parent=1 // loop_header
      %s8 = sphi 0, %s12
      %p9 = scmp.ge.s32.totalorder %s8, 4
      %s15 = sphi 0, %s27
      %s16 = sphi 0, %s23
      %s17 = sphi 0, %s15
      %s18 = sphi 0, %s16
      %s19 = sphi 0, %s17
      %s20 = sphi 0, %s18
      %s32 = sphi 0, %s34
      %s35 = sphi 0, %s32
      %s36 = sphi 0, %s35
      %s52 = sphi 0, %s36
      %s56 = sphi 0, %s56
      %s58 = sphi 0, %s56
      %s59 = sphi 0, %s58
      %s73 = sphi 0, %s59
      %s79 = sphi 0, %s81
      %s82 = sphi 0, %s79
      %s83 = sphi 0, %s82
      %s99 = sphi 0, %s83
    $region4: #{mps_forward.1} parent=1 // loop_header_branch
      %11 = sbr.rel (%p9) target = $region8
    $region5: #{mps_forward.1} parent=1 // loop_body
      %s13 = ssub.s32 %s8, 1
      %s14 = ssub.s32 %s8, 2
      %s21 = sadd.s32 1, %s16
      %p22 = scmp.ge.s32.totalorder %s21, 1
      %s23 = scalar_select %p22, 0, %s21
      %s24 = sadd.s32 1, %s15
      %s25 = scalar_select %p22, %s24, %s15
      %p26 = scmp.ge.s32.totalorder %s25, 2
      %s27 = scalar_select %p26, 0, %s25
      %s28 = ssub.s32 %s16, %s23
      %s29 = ssub.s32 %s15, %s27
      %s30 = sor.u32 %s28, %s29
      %p31 = scmp.eq.s32.totalorder %s30, 0
      %s33 = sadd.s32 %s32, 1
      %s34 = scalar_select %p31, %s32, %s33
      %p37 = pneg %p31
      %p38 = scmp.eq.s32.totalorder %s8, 1
      %p39 = por %p37, %p38
      %p40 = scmp.ne.s32.totalorder %s32, %s35
      %p41 = scmp.eq.s32.totalorder %s8, 0
      %p42 = por %p40, %p41
      %p43 = scmp.ne.s32.totalorder %s32, %s35
      %p44 = scmp.eq.s32.totalorder %s13, 1
      %p45 = por %p43, %p44
      %p46 = scmp.ne.s32.totalorder %s35, %s36
      %p47 = scmp.eq.s32.totalorder %s13, 0
      %p48 = por %p46, %p47
      %p49 = scmp.ne.s32.totalorder %s35, %s36
      %p50 = scmp.eq.s32.totalorder %s14, 1
      %p51 = por %p49, %p50
      %p53 = scmp.ne.s32.totalorder %s36, %s52
      %p54 = scmp.eq.s32.totalorder %s14, 0
      %p55 = por %p53, %p54
      %s57 = sadd.s32 %s56, 1
      %p60 = scmp.eq.s32.totalorder %s8, 1
      %p61 = scmp.ne.s32.totalorder %s56, %s58
      %p62 = scmp.eq.s32.totalorder %s8, 0
      %p63 = por %p61, %p62
      %p64 = scmp.ne.s32.totalorder %s56, %s58
      %p65 = scmp.eq.s32.totalorder %s13, 1
      %p66 = por %p64, %p65
      %p67 = scmp.ne.s32.totalorder %s58, %s59
      %p68 = scmp.eq.s32.totalorder %s13, 0
      %p69 = por %p67, %p68
      %p70 = scmp.ne.s32.totalorder %s58, %s59
      %p71 = scmp.eq.s32.totalorder %s14, 1
      %p72 = por %p70, %p71
      %p74 = scmp.ne.s32.totalorder %s59, %s73
      %p75 = scmp.eq.s32.totalorder %s14, 0
      %p76 = por %p74, %p75
      %s77 = ssub.s32 %s15, %s27
      %p78 = scmp.eq.s32.totalorder %s77, 0
      %s80 = sadd.s32 %s79, 1
      %s81 = scalar_select %p78, %s79, %s80
      %p84 = pneg %p78
      %p85 = scmp.eq.s32.totalorder %s8, 1
      %p86 = por %p84, %p85
      %p87 = scmp.ne.s32.totalorder %s79, %s82
      %p88 = scmp.eq.s32.totalorder %s8, 0
      %p89 = por %p87, %p88
      %p90 = scmp.ne.s32.totalorder %s79, %s82
      %p91 = scmp.eq.s32.totalorder %s13, 1
      %p92 = por %p90, %p91
      %p93 = scmp.ne.s32.totalorder %s82, %s83
      %p94 = scmp.eq.s32.totalorder %s13, 0
      %p95 = por %p93, %p94
      %p96 = scmp.ne.s32.totalorder %s82, %s83
      %p97 = scmp.eq.s32.totalorder %s14, 1
      %p98 = por %p96, %p97
      %p100 = scmp.ne.s32.totalorder %s83, %s99
      %p101 = scmp.eq.s32.totalorder %s14, 0
      %p102 = por %p100, %p101
      %p103 = scmp.le.s32.totalorder 1, %s8
      %p104 = scmp.lt.s32.totalorder %s8, 3
      %p105 = pnand %p103, %p104
      %p106 = pneg %p105
      // Predicated region
      $region9: #{mps_forward.1} parent=5 // pred_check
        _
      $region10: #{mps_forward.1} parent=5 // pred_check_branch
        %108 = sbr.rel (%p105) target = $region12
      $region11: #{mps_forward.1} parent=5 // pred_region
        %s109 = ssub.s32 %s8, 1
        // Predicated region
        $region13: #{mps_forward.1} parent=11 // pred_check
          %p110 = pneg %p69
        $region14: #{mps_forward.1} parent=11 // pred_check_branch
          %112 = sbr.rel (%p110) target = $region16
        $region15: #{mps_forward.1} parent=11 // pred_region
          _
        $region16: #{mps_forward.1} parent=11 // pred_fallthru
          _
      $region12: #{mps_forward.1} parent=5 // pred_fallthru
        _
      %p113 = scmp.lt.s32.totalorder %s8, 2
      // Predicated region
      $region17: #{mps_forward.1} parent=5 // pred_check
        %p114 = pneg %p113
      $region18: #{mps_forward.1} parent=5 // pred_check_branch
        %116 = sbr.rel (%p114) target = $region20
      $region19: #{mps_forward.1} parent=5 // pred_region
        // Predicated region
        $region21: #{mps_forward.1} parent=19 // pred_check
          %p117 = pneg %p42
        $region22: #{mps_forward.1} parent=19 // pred_check_branch
          %119 = sbr.rel (%p117) target = $region24
        $region23: #{mps_forward.1} parent=19 // pred_region
          %s120 = sand.u32 %s32, 1
          %s121 = sand.u32 %s32, 1
          %s122 = smul.addr %s121, 32
          %s123 = scalar_lea.vmem [#allocation2], %s122
          %s124 = smul.u32 4, %s16
          %s125 = smul.addr %s124, 2
          %s126 = sadd.s32 %s15, %s125
          %s127 = smul.addr %s126, 8
          %s128 = scalar_lea.vmem %s0, %s127
          // Predicated region
          $region25: #{mps_forward.1} parent=23 // pred_check
            _
          $region26: #{mps_forward.1} parent=23 // pred_check_branch
            %130 = sbr.rel (0) target = $region28
          $region27: #{mps_forward.1} parent=23 // pred_region
            // Predicated region
            $region29: #{mps_forward.1} parent=27 // pred_check
              _
            $region30: #{mps_forward.1} parent=27 // pred_check_branch
              %132 = sbr.rel (0) target = $region32
            $region31: #{mps_forward.1} parent=27 // pred_region
              // Predicated region
              $region44: #{mps_forward.1} parent=31 // pred_check
                _
              $region45: #{mps_forward.1} parent=31 // pred_check_branch
                %154 = sbr.rel (0) target = $region47
              $region46: #{mps_forward.1} parent=31 // pred_region
                loop: start=0, step=1, limit=1
                $region48: #{mps_forward.1} parent=46 // loop_pre_header
                  _
                $region49: #{mps_forward.1} parent=46 // loop_header
                  %s156 = sphi 0, %s160
                  %p157 = scmp.ge.s32.totalorder %s156, 1
                  %s161 = sphi %s128, %s128
                  %s162 = sphi %s123, %s123
                $region50: #{mps_forward.1} parent=46 // loop_header_branch
                  %159 = sbr.rel (%p157) target = $region54
                $region51: #{mps_forward.1} parent=46 // loop_body
                  %v163 = vld [vmem:[%s161] sm:$0xff]
                  %164 = vst [vmem:[%s162] sm:$0xff] %v163
                  %v165 = vld [vmem:[%s161 + $0x10] sm:$0xff]
                  %166 = vst [vmem:[%s162 + $0x8] sm:$0xff] %v165
                  %v167 = vld [vmem:[%s161 + $0x20] sm:$0xff]
                  %168 = vst [vmem:[%s162 + $0x10] sm:$0xff] %v167
                  %v169 = vld [vmem:[%s161 + $0x30] sm:$0xff]
                  %170 = vst [vmem:[%s162 + $0x18] sm:$0xff] %v169
                $region52: #{mps_forward.1} parent=46 // loop_footer
                  %s160 = sadd.s32 1, %s156
                $region53: #{mps_forward.1} parent=46 // loop_footer_branch
                  %155 = sbr.rel target = $region49
                $region54: #{mps_forward.1} parent=46 // loop_exit
                  _
              $region47: #{mps_forward.1} parent=31 // pred_fallthru
                _
              // Predicated region
              $region55: #{mps_forward.1} parent=31 // pred_check
                _
              $region56: #{mps_forward.1} parent=31 // pred_check_branch
                %172 = sbr.rel target = $region58
              $region57: #{mps_forward.1} parent=31 // pred_region
                _
              $region58: #{mps_forward.1} parent=31 // pred_fallthru
                _
            $region32: #{mps_forward.1} parent=27 // pred_fallthru
              _
            // Predicated region
            $region33: #{mps_forward.1} parent=27 // pred_check
              _
            $region34: #{mps_forward.1} parent=27 // pred_check_branch
              %134 = sbr.rel target = $region36
            $region35: #{mps_forward.1} parent=27 // pred_region
              %s136 = ssub.s32 256, 1
              loop: start=0, step=1, limit=1
              $region37: #{mps_forward.1} parent=35 // loop_pre_header
                _
              $region38: #{mps_forward.1} parent=35 // loop_header
                %s138 = sphi 0, %s142
                %p139 = scmp.ge.s32.totalorder %s138, 1
                %s143 = sphi %s128, %s128
                %s144 = sphi %s123, %s123
              $region39: #{mps_forward.1} parent=35 // loop_header_branch
                %141 = sbr.rel (%p139) target = $region43
              $region40: #{mps_forward.1} parent=35 // loop_body
                %v145 = vld [vmem:[%s143] sm:%s136]
                %146 = vst [vmem:[%s144] sm:%s136] %v145
                %v147 = vld [vmem:[%s143 + $0x10] sm:%s136]
                %148 = vst [vmem:[%s144 + $0x8] sm:%s136] %v147
                %v149 = vld [vmem:[%s143 + $0x20] sm:%s136]
                %150 = vst [vmem:[%s144 + $0x10] sm:%s136] %v149
                %v151 = vld [vmem:[%s143 + $0x30] sm:%s136]
                %152 = vst [vmem:[%s144 + $0x18] sm:%s136] %v151
              $region41: #{mps_forward.1} parent=35 // loop_footer
                %s142 = sadd.s32 1, %s138
              $region42: #{mps_forward.1} parent=35 // loop_footer_branch
                %137 = sbr.rel target = $region38
              $region43: #{mps_forward.1} parent=35 // loop_exit
                _
            $region36: #{mps_forward.1} parent=27 // pred_fallthru
              _
          $region28: #{mps_forward.1} parent=23 // pred_fallthru
            _
          %173 = vnop
        $region24: #{mps_forward.1} parent=19 // pred_fallthru
          _
      $region20: #{mps_forward.1} parent=5 // pred_fallthru
        _
      %p174 = scmp.le.s32.totalorder 1, %s8
      %p175 = scmp.lt.s32.totalorder %s8, 3
      %p176 = pnand %p174, %p175
      %p177 = pneg %p176
      // Predicated region
      $region59: #{mps_forward.1} parent=5 // pred_check
        _
      $region60: #{mps_forward.1} parent=5 // pred_check_branch
        %179 = sbr.rel (%p176) target = $region62
      $region61: #{mps_forward.1} parent=5 // pred_region
        %s180 = ssub.s32 %s8, 1
        %s181 = sand.u32 %s35, 1
        %s182 = sand.u32 %s35, 1
        %s183 = smul.addr %s182, 32
        %s184 = scalar_lea.vmem [#allocation2], %s183
        // Predicated region
        $region63: #{mps_forward.1} parent=61 // pred_check
          %p185 = pneg %p48
        $region64: #{mps_forward.1} parent=61 // pred_check_branch
          %187 = sbr.rel (%p185) target = $region66
        $region65: #{mps_forward.1} parent=61 // pred_region
          _
        $region66: #{mps_forward.1} parent=61 // pred_fallthru
          _
        %s188 = sand.u32 %s35, 1
        %s189 = sand.u32 %s35, 1
        %s190 = smul.addr %s189, 32
        %s191 = scalar_lea.vmem [#allocation2], %s190
        %p192 = pneg %p48
        %p193 = pneg %p45
        %p194 = pneg %p69
        %p195 = pneg %p66
        %p196 = pneg %p95
        %p197 = pneg %p92
        %p198 = scmp.lt.s32.totalorder %s17, 1
        %s199 = scalar_select %p198, %s17, 1
        %s200 = smul.addr %s199, 8
        %s201 = scalar_lea.vmem %s2, %s200
        %s202 = smul.u32 4, %s18
        %p203 = scmp.lt.s32.totalorder %s17, 1
        %s204 = scalar_select %p203, %s17, 1
        %s205 = smul.addr %s204, 8
        %s206 = scalar_lea.vmem %s2, %s205
        %p207 = scmp.eq.s32.totalorder %s18, 0
        // Predicated region
        $region67: #{mps_forward.1} parent=61 // pred_check
          %p208 = pneg %p207
        $region68: #{mps_forward.1} parent=61 // pred_check_branch
          %210 = sbr.rel (%p208) target = $region70
        $region69: #{mps_forward.1} parent=61 // pred_region
          %v211 = vlaneseq
          %v212 = vshrl.u32 %v211, 7
          %vm213 = vcmp.eq.s32.totalorder %v212, 0
          %v214 = vsel %vm213, 1.0, 0.0
          %215 = vst [vmem:[%s206] sm:$0xff] %v214
        $region70: #{mps_forward.1} parent=61 // pred_fallthru
          _
        %s216 = smul.u32 %s18, 4
        %v217 = vld [vmem:[%s206] sm:$0xff]
        %v218 = vld [vmem:[%s184] sm:$0xff]
        %s219 = smul.u32 %s216, 8
        %s220 = scalar_lea.vmem %s1, %s219
        %v221 = vld [vmem:[%s220] sm:$0xff]
        %v223 = vcombine.high %v218, %v218
        %v225 = vunpack.c.l.s4 1966171168
        %v226 = vunpack.c.0.s8 %v225
        %v227 = vlaneseq
        %v228 = vshrl.u32 %v227, 7
        %v229 = vsub.s32 %v226, %v228
        %v230 = vrot.slane %v218, %v229
        %v232 = vunpack.c.l.s4 1966171168
        %v233 = vunpack.c.0.s8 %v232
        %v234 = vlaneseq
        %v235 = vshrl.u32 %v234, 7
        %v236 = vsub.s32 %v233, %v235
        %v237 = vrot.slane %v223, %v236
        %v238 = vcombine.high %v237, %v237
        %v240 = vunpack.c.l.s4 1966171168
        %v241 = vunpack.c.0.s8 %v240
        %v242 = vlaneseq
        %v243 = vshrl.u32 %v242, 7
        %v244 = vsub.s32 %v241, %v243
        %v245 = vrot.slane %v230, %v244
        %v247 = vunpack.c.l.s4 1966171168
        %v248 = vunpack.c.0.s8 %v247
        %v249 = vlaneseq
        %v250 = vshrl.u32 %v249, 7
        %v251 = vsub.s32 %v248, %v250
        %v252 = vrot.slane %v237, %v251
        %v254 = vunpack.c.l.s4 1966171168
        %v255 = vunpack.c.0.s8 %v254
        %v256 = vlaneseq
        %v257 = vshrl.u32 %v256, 7
        %v258 = vsub.s32 %v255, %v257
        %v259 = vrot.slane %v238, %v258
        %v260 = vcombine.high %v252, %v252
        %v261 = vcombine.high %v259, %v259
        %v262 = vlaneseq
        %v263 = vshrl.u32 %v262, 7
        %v264 = vsub.s32 0, %v263
        %v265 = vrot.slane %v252, %v264
        %v266 = vlaneseq
        %v267 = vshrl.u32 %v266, 7
        %v268 = vsub.s32 0, %v267
        %v269 = vrot.slane %v259, %v268
        %v270 = vlaneseq
        %v271 = vshrl.u32 %v270, 7
        %v272 = vsub.s32 0, %v271
        %v273 = vrot.slane %v260, %v272
        %v274 = vlaneseq
        %v275 = vshrl.u32 %v274, 7
        %v276 = vsub.s32 0, %v275
        %v277 = vrot.slane %v261, %v276
        %v282 = vmul.f32 %v265, %v217
        %v283 = vmul.f32 %v269, %v217
        %v284 = vmul.f32 %v273, %v217
        %v285 = vmul.f32 %v277, %v217
        %v286 = vcombine.high %v230, %v230
        %v288 = vunpack.c.l.s4 1966171168
        %v289 = vunpack.c.0.s8 %v288
        %v290 = vlaneseq
        %v291 = vshrl.u32 %v290, 7
        %v292 = vsub.s32 %v289, %v291
        %v293 = vrot.slane %v286, %v292
        %v294 = vcombine.high %v245, %v245
        %v295 = vcombine.high %v293, %v293
        %v296 = vlaneseq
        %v297 = vshrl.u32 %v296, 7
        %v298 = vsub.s32 0, %v297
        %v299 = vrot.slane %v245, %v298
        %v300 = vlaneseq
        %v301 = vshrl.u32 %v300, 7
        %v302 = vsub.s32 0, %v301
        %v303 = vrot.slane %v293, %v302
        %v304 = vlaneseq
        %v305 = vshrl.u32 %v304, 7
        %v306 = vsub.s32 0, %v305
        %v307 = vrot.slane %v294, %v306
        %v308 = vlaneseq
        %v309 = vshrl.u32 %v308, 7
        %v310 = vsub.s32 0, %v309
        %v311 = vrot.slane %v295, %v310
        %v316 = vmul.f32 %v299, %v282
        %v317 = vmul.f32 %v299, %v283
        %v318 = vmul.f32 %v299, %v284
        %v319 = vmul.f32 %v299, %v285
        %v320 = vmul.f32 %v303, %v282
        %v321 = vmul.f32 %v303, %v283
        %v322 = vmul.f32 %v303, %v284
        %v323 = vmul.f32 %v303, %v285
        %v324 = vmul.f32 %v307, %v282
        %v325 = vmul.f32 %v307, %v283
        %v326 = vmul.f32 %v307, %v284
        %v327 = vmul.f32 %v307, %v285
        %v328 = vmul.f32 %v311, %v282
        %v329 = vmul.f32 %v311, %v283
        %v330 = vmul.f32 %v311, %v284
        %v331 = vmul.f32 %v311, %v285
        %332 = vmatprep.subr.mxu0 0.0
        %333 = vmatpush1.msra.mxu0 %v331
        %334 = vmatprep.subr.mxu0 0.0
        %335 = vmatpush1.msra.mxu0 %v330
        %336 = vmatprep.subr.mxu0 0.0
        %337 = vmatpush1.msra.mxu0 %v329
        %338 = vmatprep.subr.mxu0 0.0
        %339 = vmatpush1.msra.mxu0 %v328
        %340 = vmatprep.subr.mxu0 0.0
        %341 = vmatpush1.msra.mxu0 %v327
        %342 = vmatprep.subr.mxu0 0.0
        %343 = vmatpush1.msra.mxu0 %v326
        %344 = vmatprep.subr.mxu0 0.0
        %345 = vmatpush1.msra.mxu0 %v325
        %346 = vmatprep.subr.mxu0 0.0
        %347 = vmatpush1.msra.mxu0 %v324
        %348 = vmatprep.subr.mxu0 0.0
        %349 = vmatpush1.msra.mxu0 %v323
        %350 = vmatprep.subr.mxu0 0.0
        %351 = vmatpush1.msra.mxu0 %v322
        %352 = vmatprep.subr.mxu0 0.0
        %353 = vmatpush1.msra.mxu0 %v321
        %354 = vmatprep.subr.mxu0 0.0
        %355 = vmatpush1.msra.mxu0 %v320
        %356 = vmatprep.subr.mxu0 0.0
        %357 = vmatpush1.msra.mxu0 %v319
        %358 = vmatprep.subr.mxu0 0.0
        %359 = vmatpush1.msra.mxu0 %v318
        %360 = vmatprep.subr.mxu0 0.0
        %361 = vmatpush1.msra.mxu0 %v317
        %362 = vmatprep.subr.mxu0 0.0
        %363 = vmatpush1.msra.mxu0 %v316
        %364 = vmatprep.subr.mxu0 0.0
        %365 = vmatpush2.msra.mxu0 0.0
        %366 = vmatprep.subr.mxu0 0.0
        %367 = vmatpush2.msra.mxu0 0.0
        %368 = vmatprep.subr.mxu0 0.0
        %369 = vmatpush2.msra.mxu0 0.0
        %370 = vmatprep.subr.mxu0 0.0
        %371 = vmatpush2.msra.mxu0 0.0
        %372 = vmatprep.subr.mxu0 0.0
        %373 = vmatpush2.msra.mxu0 0.0
        %374 = vmatprep.subr.mxu0 0.0
        %375 = vmatpush2.msra.mxu0 0.0
        %376 = vmatprep.subr.mxu0 0.0
        %377 = vmatpush2.msra.mxu0 0.0
        %378 = vmatprep.subr.mxu0 0.0
        %379 = vmatpush2.msra.mxu0 0.0
        %380 = vmatprep.subr.mxu0 0.0
        %381 = vmatpush2.msra.mxu0 0.0
        %382 = vmatprep.subr.mxu0 0.0
        %383 = vmatpush2.msra.mxu0 0.0
        %384 = vmatprep.subr.mxu0 0.0
        %385 = vmatpush2.msra.mxu0 0.0
        %386 = vmatprep.subr.mxu0 0.0
        %387 = vmatpush2.msra.mxu0 0.0
        %388 = vmatprep.subr.mxu0 0.0
        %389 = vmatpush2.msra.mxu0 0.0
        %390 = vmatprep.subr.mxu0 0.0
        %391 = vmatpush2.msra.mxu0 0.0
        %392 = vmatprep.subr.mxu0 0.0
        %393 = vmatpush2.msra.mxu0 0.0
        %394 = vmatprep.subr.mxu0 0.0
        %395 = vmatpush2.msra.mxu0 0.0
        %396 = vmatprep.mubr.f32.mxu0 0.0
        %397 = vmatmul.mubr.f32.gmra.mxu0 %v221
        %v398 = vpop.f32.mrf.mxu0
        %v399 = vadd.f32 0.0, %v398
        %v400 = vpop.f32.mrf.mxu0
        %401 = vdwg.mxu0
        %s402 = scalar_lea.vmem %s184, 8 [#allocation2]
        %v403 = vld [vmem:[%s402] sm:$0xff]
        %s404 = sadd.s32 %s216, 1
        %s405 = smul.u32 %s404, 8
        %s406 = scalar_lea.vmem %s1, %s405
        %v407 = vld [vmem:[%s406] sm:$0xff]
        %v409 = vcombine.high %v403, %v403
        %v411 = vunpack.c.l.s4 1966171168
        %v412 = vunpack.c.0.s8 %v411
        %v413 = vlaneseq
        %v414 = vshrl.u32 %v413, 7
        %v415 = vsub.s32 %v412, %v414
        %v416 = vrot.slane %v403, %v415
        %v418 = vunpack.c.l.s4 1966171168
        %v419 = vunpack.c.0.s8 %v418
        %v420 = vlaneseq
        %v421 = vshrl.u32 %v420, 7
        %v422 = vsub.s32 %v419, %v421
        %v423 = vrot.slane %v409, %v422
        %v424 = vcombine.high %v423, %v423
        %v426 = vunpack.c.l.s4 1966171168
        %v427 = vunpack.c.0.s8 %v426
        %v428 = vlaneseq
        %v429 = vshrl.u32 %v428, 7
        %v430 = vsub.s32 %v427, %v429
        %v431 = vrot.slane %v416, %v430
        %v433 = vunpack.c.l.s4 1966171168
        %v434 = vunpack.c.0.s8 %v433
        %v435 = vlaneseq
        %v436 = vshrl.u32 %v435, 7
        %v437 = vsub.s32 %v434, %v436
        %v438 = vrot.slane %v423, %v437
        %v440 = vunpack.c.l.s4 1966171168
        %v441 = vunpack.c.0.s8 %v440
        %v442 = vlaneseq
        %v443 = vshrl.u32 %v442, 7
        %v444 = vsub.s32 %v441, %v443
        %v445 = vrot.slane %v424, %v444
        %v446 = vcombine.high %v438, %v438
        %v447 = vcombine.high %v445, %v445
        %v448 = vlaneseq
        %v449 = vshrl.u32 %v448, 7
        %v450 = vsub.s32 0, %v449
        %v451 = vrot.slane %v438, %v450
        %v452 = vlaneseq
        %v453 = vshrl.u32 %v452, 7
        %v454 = vsub.s32 0, %v453
        %v455 = vrot.slane %v445, %v454
        %v456 = vlaneseq
        %v457 = vshrl.u32 %v456, 7
        %v458 = vsub.s32 0, %v457
        %v459 = vrot.slane %v446, %v458
        %v460 = vlaneseq
        %v461 = vshrl.u32 %v460, 7
        %v462 = vsub.s32 0, %v461
        %v463 = vrot.slane %v447, %v462
        %v468 = vmul.f32 %v451, %v399
        %v469 = vmul.f32 %v455, %v399
        %v470 = vmul.f32 %v459, %v399
        %v471 = vmul.f32 %v463, %v399
        %v472 = vcombine.high %v416, %v416
        %v474 = vunpack.c.l.s4 1966171168
        %v475 = vunpack.c.0.s8 %v474
        %v476 = vlaneseq
        %v477 = vshrl.u32 %v476, 7
        %v478 = vsub.s32 %v475, %v477
        %v479 = vrot.slane %v472, %v478
        %v480 = vcombine.high %v431, %v431
        %v481 = vcombine.high %v479, %v479
        %v482 = vlaneseq
        %v483 = vshrl.u32 %v482, 7
        %v484 = vsub.s32 0, %v483
        %v485 = vrot.slane %v431, %v484
        %v486 = vlaneseq
        %v487 = vshrl.u32 %v486, 7
        %v488 = vsub.s32 0, %v487
        %v489 = vrot.slane %v479, %v488
        %v490 = vlaneseq
        %v491 = vshrl.u32 %v490, 7
        %v492 = vsub.s32 0, %v491
        %v493 = vrot.slane %v480, %v492
        %v494 = vlaneseq
        %v495 = vshrl.u32 %v494, 7
        %v496 = vsub.s32 0, %v495
        %v497 = vrot.slane %v481, %v496
        %v502 = vmul.f32 %v485, %v468
        %v503 = vmul.f32 %v485, %v469
        %v504 = vmul.f32 %v485, %v470
        %v505 = vmul.f32 %v485, %v471
        %v506 = vmul.f32 %v489, %v468
        %v507 = vmul.f32 %v489, %v469
        %v508 = vmul.f32 %v489, %v470
        %v509 = vmul.f32 %v489, %v471
        %v510 = vmul.f32 %v493, %v468
        %v511 = vmul.f32 %v493, %v469
        %v512 = vmul.f32 %v493, %v470
        %v513 = vmul.f32 %v493, %v471
        %v514 = vmul.f32 %v497, %v468
        %v515 = vmul.f32 %v497, %v469
        %v516 = vmul.f32 %v497, %v470
        %v517 = vmul.f32 %v497, %v471
        %518 = vmatprep.subr.mxu0 0.0
        %519 = vmatpush1.msra.mxu0 %v517
        %520 = vmatprep.subr.mxu0 0.0
        %521 = vmatpush1.msra.mxu0 %v516
        %522 = vmatprep.subr.mxu0 0.0
        %523 = vmatpush1.msra.mxu0 %v515
        %524 = vmatprep.subr.mxu0 0.0
        %525 = vmatpush1.msra.mxu0 %v514
        %526 = vmatprep.subr.mxu0 0.0
        %527 = vmatpush1.msra.mxu0 %v513
        %528 = vmatprep.subr.mxu0 0.0
        %529 = vmatpush1.msra.mxu0 %v512
        %530 = vmatprep.subr.mxu0 0.0
        %531 = vmatpush1.msra.mxu0 %v511
        %532 = vmatprep.subr.mxu0 0.0
        %533 = vmatpush1.msra.mxu0 %v510
        %534 = vmatprep.subr.mxu0 0.0
        %535 = vmatpush1.msra.mxu0 %v509
        %536 = vmatprep.subr.mxu0 0.0
        %537 = vmatpush1.msra.mxu0 %v508
        %538 = vmatprep.subr.mxu0 0.0
        %539 = vmatpush1.msra.mxu0 %v507
        %540 = vmatprep.subr.mxu0 0.0
        %541 = vmatpush1.msra.mxu0 %v506
        %542 = vmatprep.subr.mxu0 0.0
        %543 = vmatpush1.msra.mxu0 %v505
        %544 = vmatprep.subr.mxu0 0.0
        %545 = vmatpush1.msra.mxu0 %v504
        %546 = vmatprep.subr.mxu0 0.0
        %547 = vmatpush1.msra.mxu0 %v503
        %548 = vmatprep.subr.mxu0 0.0
        %549 = vmatpush1.msra.mxu0 %v502
        %550 = vmatprep.subr.mxu0 0.0
        %551 = vmatpush2.msra.mxu0 0.0
        %552 = vmatprep.subr.mxu0 0.0
        %553 = vmatpush2.msra.mxu0 0.0
        %554 = vmatprep.subr.mxu0 0.0
        %555 = vmatpush2.msra.mxu0 0.0
        %556 = vmatprep.subr.mxu0 0.0
        %557 = vmatpush2.msra.mxu0 0.0
        %558 = vmatprep.subr.mxu0 0.0
        %559 = vmatpush2.msra.mxu0 0.0
        %560 = vmatprep.subr.mxu0 0.0
        %561 = vmatpush2.msra.mxu0 0.0
        %562 = vmatprep.subr.mxu0 0.0
        %563 = vmatpush2.msra.mxu0 0.0
        %564 = vmatprep.subr.mxu0 0.0
        %565 = vmatpush2.msra.mxu0 0.0
        %566 = vmatprep.subr.mxu0 0.0
        %567 = vmatpush2.msra.mxu0 0.0
        %568 = vmatprep.subr.mxu0 0.0
        %569 = vmatpush2.msra.mxu0 0.0
        %570 = vmatprep.subr.mxu0 0.0
        %571 = vmatpush2.msra.mxu0 0.0
        %572 = vmatprep.subr.mxu0 0.0
        %573 = vmatpush2.msra.mxu0 0.0
        %574 = vmatprep.subr.mxu0 0.0
        %575 = vmatpush2.msra.mxu0 0.0
        %576 = vmatprep.subr.mxu0 0.0
        %577 = vmatpush2.msra.mxu0 0.0
        %578 = vmatprep.subr.mxu0 0.0
        %579 = vmatpush2.msra.mxu0 0.0
        %580 = vmatprep.subr.mxu0 0.0
        %581 = vmatpush2.msra.mxu0 0.0
        %582 = vmatprep.mubr.f32.mxu0 0.0
        %583 = vmatmul.mubr.f32.gmra.mxu0 %v407
        %v584 = vpop.f32.mrf.mxu0
        %v585 = vadd.f32 0.0, %v584
        %v586 = vpop.f32.mrf.mxu0
        %587 = vdwg.mxu0
        %s588 = scalar_lea.vmem %s184, 16 [#allocation2]
        %v589 = vld [vmem:[%s588] sm:$0xff]
        %s590 = sadd.s32 %s216, 2
        %s591 = smul.u32 %s590, 8
        %s592 = scalar_lea.vmem %s1, %s591
        %v593 = vld [vmem:[%s592] sm:$0xff]
        %v595 = vcombine.high %v589, %v589
        %v597 = vunpack.c.l.s4 1966171168
        %v598 = vunpack.c.0.s8 %v597
        %v599 = vlaneseq
        %v600 = vshrl.u32 %v599, 7
        %v601 = vsub.s32 %v598, %v600
        %v602 = vrot.slane %v589, %v601
        %v604 = vunpack.c.l.s4 1966171168
        %v605 = vunpack.c.0.s8 %v604
        %v606 = vlaneseq
        %v607 = vshrl.u32 %v606, 7
        %v608 = vsub.s32 %v605, %v607
        %v609 = vrot.slane %v595, %v608
        %v610 = vcombine.high %v609, %v609
        %v612 = vunpack.c.l.s4 1966171168
        %v613 = vunpack.c.0.s8 %v612
        %v614 = vlaneseq
        %v615 = vshrl.u32 %v614, 7
        %v616 = vsub.s32 %v613, %v615
        %v617 = vrot.slane %v602, %v616
        %v619 = vunpack.c.l.s4 1966171168
        %v620 = vunpack.c.0.s8 %v619
        %v621 = vlaneseq
        %v622 = vshrl.u32 %v621, 7
        %v623 = vsub.s32 %v620, %v622
        %v624 = vrot.slane %v609, %v623
        %v626 = vunpack.c.l.s4 1966171168
        %v627 = vunpack.c.0.s8 %v626
        %v628 = vlaneseq
        %v629 = vshrl.u32 %v628, 7
        %v630 = vsub.s32 %v627, %v629
        %v631 = vrot.slane %v610, %v630
        %v632 = vcombine.high %v624, %v624
        %v633 = vcombine.high %v631, %v631
        %v634 = vlaneseq
        %v635 = vshrl.u32 %v634, 7
        %v636 = vsub.s32 0, %v635
        %v637 = vrot.slane %v624, %v636
        %v638 = vlaneseq
        %v639 = vshrl.u32 %v638, 7
        %v640 = vsub.s32 0, %v639
        %v641 = vrot.slane %v631, %v640
        %v642 = vlaneseq
        %v643 = vshrl.u32 %v642, 7
        %v644 = vsub.s32 0, %v643
        %v645 = vrot.slane %v632, %v644
        %v646 = vlaneseq
        %v647 = vshrl.u32 %v646, 7
        %v648 = vsub.s32 0, %v647
        %v649 = vrot.slane %v633, %v648
        %v654 = vmul.f32 %v637, %v585
        %v655 = vmul.f32 %v641, %v585
        %v656 = vmul.f32 %v645, %v585
        %v657 = vmul.f32 %v649, %v585
        %v658 = vcombine.high %v602, %v602
        %v660 = vunpack.c.l.s4 1966171168
        %v661 = vunpack.c.0.s8 %v660
        %v662 = vlaneseq
        %v663 = vshrl.u32 %v662, 7
        %v664 = vsub.s32 %v661, %v663
        %v665 = vrot.slane %v658, %v664
        %v666 = vcombine.high %v617, %v617
        %v667 = vcombine.high %v665, %v665
        %v668 = vlaneseq
        %v669 = vshrl.u32 %v668, 7
        %v670 = vsub.s32 0, %v669
        %v671 = vrot.slane %v617, %v670
        %v672 = vlaneseq
        %v673 = vshrl.u32 %v672, 7
        %v674 = vsub.s32 0, %v673
        %v675 = vrot.slane %v665, %v674
        %v676 = vlaneseq
        %v677 = vshrl.u32 %v676, 7
        %v678 = vsub.s32 0, %v677
        %v679 = vrot.slane %v666, %v678
        %v680 = vlaneseq
        %v681 = vshrl.u32 %v680, 7
        %v682 = vsub.s32 0, %v681
        %v683 = vrot.slane %v667, %v682
        %v688 = vmul.f32 %v671, %v654
        %v689 = vmul.f32 %v671, %v655
        %v690 = vmul.f32 %v671, %v656
        %v691 = vmul.f32 %v671, %v657
        %v692 = vmul.f32 %v675, %v654
        %v693 = vmul.f32 %v675, %v655
        %v694 = vmul.f32 %v675, %v656
        %v695 = vmul.f32 %v675, %v657
        %v696 = vmul.f32 %v679, %v654
        %v697 = vmul.f32 %v679, %v655
        %v698 = vmul.f32 %v679, %v656
        %v699 = vmul.f32 %v679, %v657
        %v700 = vmul.f32 %v683, %v654
        %v701 = vmul.f32 %v683, %v655
        %v702 = vmul.f32 %v683, %v656
        %v703 = vmul.f32 %v683, %v657
        %704 = vmatprep.subr.mxu0 0.0
        %705 = vmatpush1.msra.mxu0 %v703
        %706 = vmatprep.subr.mxu0 0.0
        %707 = vmatpush1.msra.mxu0 %v702
        %708 = vmatprep.subr.mxu0 0.0
        %709 = vmatpush1.msra.mxu0 %v701
        %710 = vmatprep.subr.mxu0 0.0
        %711 = vmatpush1.msra.mxu0 %v700
        %712 = vmatprep.subr.mxu0 0.0
        %713 = vmatpush1.msra.mxu0 %v699
        %714 = vmatprep.subr.mxu0 0.0
        %715 = vmatpush1.msra.mxu0 %v698
        %716 = vmatprep.subr.mxu0 0.0
        %717 = vmatpush1.msra.mxu0 %v697
        %718 = vmatprep.subr.mxu0 0.0
        %719 = vmatpush1.msra.mxu0 %v696
        %720 = vmatprep.subr.mxu0 0.0
        %721 = vmatpush1.msra.mxu0 %v695
        %722 = vmatprep.subr.mxu0 0.0
        %723 = vmatpush1.msra.mxu0 %v694
        %724 = vmatprep.subr.mxu0 0.0
        %725 = vmatpush1.msra.mxu0 %v693
        %726 = vmatprep.subr.mxu0 0.0
        %727 = vmatpush1.msra.mxu0 %v692
        %728 = vmatprep.subr.mxu0 0.0
        %729 = vmatpush1.msra.mxu0 %v691
        %730 = vmatprep.subr.mxu0 0.0
        %731 = vmatpush1.msra.mxu0 %v690
        %732 = vmatprep.subr.mxu0 0.0
        %733 = vmatpush1.msra.mxu0 %v689
        %734 = vmatprep.subr.mxu0 0.0
        %735 = vmatpush1.msra.mxu0 %v688
        %736 = vmatprep.subr.mxu0 0.0
        %737 = vmatpush2.msra.mxu0 0.0
        %738 = vmatprep.subr.mxu0 0.0
        %739 = vmatpush2.msra.mxu0 0.0
        %740 = vmatprep.subr.mxu0 0.0
        %741 = vmatpush2.msra.mxu0 0.0
        %742 = vmatprep.subr.mxu0 0.0
        %743 = vmatpush2.msra.mxu0 0.0
        %744 = vmatprep.subr.mxu0 0.0
        %745 = vmatpush2.msra.mxu0 0.0
        %746 = vmatprep.subr.mxu0 0.0
        %747 = vmatpush2.msra.mxu0 0.0
        %748 = vmatprep.subr.mxu0 0.0
        %749 = vmatpush2.msra.mxu0 0.0
        %750 = vmatprep.subr.mxu0 0.0
        %751 = vmatpush2.msra.mxu0 0.0
        %752 = vmatprep.subr.mxu0 0.0
        %753 = vmatpush2.msra.mxu0 0.0
        %754 = vmatprep.subr.mxu0 0.0
        %755 = vmatpush2.msra.mxu0 0.0
        %756 = vmatprep.subr.mxu0 0.0
        %757 = vmatpush2.msra.mxu0 0.0
        %758 = vmatprep.subr.mxu0 0.0
        %759 = vmatpush2.msra.mxu0 0.0
        %760 = vmatprep.subr.mxu0 0.0
        %761 = vmatpush2.msra.mxu0 0.0
        %762 = vmatprep.subr.mxu0 0.0
        %763 = vmatpush2.msra.mxu0 0.0
        %764 = vmatprep.subr.mxu0 0.0
        %765 = vmatpush2.msra.mxu0 0.0
        %766 = vmatprep.subr.mxu0 0.0
        %767 = vmatpush2.msra.mxu0 0.0
        %768 = vmatprep.mubr.f32.mxu0 0.0
        %769 = vmatmul.mubr.f32.gmra.mxu0 %v593
        %v770 = vpop.f32.mrf.mxu0
        %v771 = vadd.f32 0.0, %v770
        %v772 = vpop.f32.mrf.mxu0
        %773 = vdwg.mxu0
        %s774 = scalar_lea.vmem %s184, 24 [#allocation2]
        %v775 = vld [vmem:[%s774] sm:$0xff]
        %s776 = sadd.s32 %s216, 3
        %s777 = smul.u32 %s776, 8
        %s778 = scalar_lea.vmem %s1, %s777
        %v779 = vld [vmem:[%s778] sm:$0xff]
        %v781 = vcombine.high %v775, %v775
        %v783 = vunpack.c.l.s4 1966171168
        %v784 = vunpack.c.0.s8 %v783
        %v785 = vlaneseq
        %v786 = vshrl.u32 %v785, 7
        %v787 = vsub.s32 %v784, %v786
        %v788 = vrot.slane %v775, %v787
        %v790 = vunpack.c.l.s4 1966171168
        %v791 = vunpack.c.0.s8 %v790
        %v792 = vlaneseq
        %v793 = vshrl.u32 %v792, 7
        %v794 = vsub.s32 %v791, %v793
        %v795 = vrot.slane %v781, %v794
        %v796 = vcombine.high %v795, %v795
        %v798 = vunpack.c.l.s4 1966171168
        %v799 = vunpack.c.0.s8 %v798
        %v800 = vlaneseq
        %v801 = vshrl.u32 %v800, 7
        %v802 = vsub.s32 %v799, %v801
        %v803 = vrot.slane %v788, %v802
        %v805 = vunpack.c.l.s4 1966171168
        %v806 = vunpack.c.0.s8 %v805
        %v807 = vlaneseq
        %v808 = vshrl.u32 %v807, 7
        %v809 = vsub.s32 %v806, %v808
        %v810 = vrot.slane %v795, %v809
        %v812 = vunpack.c.l.s4 1966171168
        %v813 = vunpack.c.0.s8 %v812
        %v814 = vlaneseq
        %v815 = vshrl.u32 %v814, 7
        %v816 = vsub.s32 %v813, %v815
        %v817 = vrot.slane %v796, %v816
        %v818 = vcombine.high %v810, %v810
        %v819 = vcombine.high %v817, %v817
        %v820 = vlaneseq
        %v821 = vshrl.u32 %v820, 7
        %v822 = vsub.s32 0, %v821
        %v823 = vrot.slane %v810, %v822
        %v824 = vlaneseq
        %v825 = vshrl.u32 %v824, 7
        %v826 = vsub.s32 0, %v825
        %v827 = vrot.slane %v817, %v826
        %v828 = vlaneseq
        %v829 = vshrl.u32 %v828, 7
        %v830 = vsub.s32 0, %v829
        %v831 = vrot.slane %v818, %v830
        %v832 = vlaneseq
        %v833 = vshrl.u32 %v832, 7
        %v834 = vsub.s32 0, %v833
        %v835 = vrot.slane %v819, %v834
        %v840 = vmul.f32 %v823, %v771
        %v841 = vmul.f32 %v827, %v771
        %v842 = vmul.f32 %v831, %v771
        %v843 = vmul.f32 %v835, %v771
        %v844 = vcombine.high %v788, %v788
        %v846 = vunpack.c.l.s4 1966171168
        %v847 = vunpack.c.0.s8 %v846
        %v848 = vlaneseq
        %v849 = vshrl.u32 %v848, 7
        %v850 = vsub.s32 %v847, %v849
        %v851 = vrot.slane %v844, %v850
        %v852 = vcombine.high %v803, %v803
        %v853 = vcombine.high %v851, %v851
        %v854 = vlaneseq
        %v855 = vshrl.u32 %v854, 7
        %v856 = vsub.s32 0, %v855
        %v857 = vrot.slane %v803, %v856
        %v858 = vlaneseq
        %v859 = vshrl.u32 %v858, 7
        %v860 = vsub.s32 0, %v859
        %v861 = vrot.slane %v851, %v860
        %v862 = vlaneseq
        %v863 = vshrl.u32 %v862, 7
        %v864 = vsub.s32 0, %v863
        %v865 = vrot.slane %v852, %v864
        %v866 = vlaneseq
        %v867 = vshrl.u32 %v866, 7
        %v868 = vsub.s32 0, %v867
        %v869 = vrot.slane %v853, %v868
        %v874 = vmul.f32 %v857, %v840
        %v875 = vmul.f32 %v857, %v841
        %v876 = vmul.f32 %v857, %v842
        %v877 = vmul.f32 %v857, %v843
        %v878 = vmul.f32 %v861, %v840
        %v879 = vmul.f32 %v861, %v841
        %v880 = vmul.f32 %v861, %v842
        %v881 = vmul.f32 %v861, %v843
        %v882 = vmul.f32 %v865, %v840
        %v883 = vmul.f32 %v865, %v841
        %v884 = vmul.f32 %v865, %v842
        %v885 = vmul.f32 %v865, %v843
        %v886 = vmul.f32 %v869, %v840
        %v887 = vmul.f32 %v869, %v841
        %v888 = vmul.f32 %v869, %v842
        %v889 = vmul.f32 %v869, %v843
        %890 = vmatprep.subr.mxu0 0.0
        %891 = vmatpush1.msra.mxu0 %v889
        %892 = vmatprep.subr.mxu0 0.0
        %893 = vmatpush1.msra.mxu0 %v888
        %894 = vmatprep.subr.mxu0 0.0
        %895 = vmatpush1.msra.mxu0 %v887
        %896 = vmatprep.subr.mxu0 0.0
        %897 = vmatpush1.msra.mxu0 %v886
        %898 = vmatprep.subr.mxu0 0.0
        %899 = vmatpush1.msra.mxu0 %v885
        %900 = vmatprep.subr.mxu0 0.0
        %901 = vmatpush1.msra.mxu0 %v884
        %902 = vmatprep.subr.mxu0 0.0
        %903 = vmatpush1.msra.mxu0 %v883
        %904 = vmatprep.subr.mxu0 0.0
        %905 = vmatpush1.msra.mxu0 %v882
        %906 = vmatprep.subr.mxu0 0.0
        %907 = vmatpush1.msra.mxu0 %v881
        %908 = vmatprep.subr.mxu0 0.0
        %909 = vmatpush1.msra.mxu0 %v880
        %910 = vmatprep.subr.mxu0 0.0
        %911 = vmatpush1.msra.mxu0 %v879
        %912 = vmatprep.subr.mxu0 0.0
        %913 = vmatpush1.msra.mxu0 %v878
        %914 = vmatprep.subr.mxu0 0.0
        %915 = vmatpush1.msra.mxu0 %v877
        %916 = vmatprep.subr.mxu0 0.0
        %917 = vmatpush1.msra.mxu0 %v876
        %918 = vmatprep.subr.mxu0 0.0
        %919 = vmatpush1.msra.mxu0 %v875
        %920 = vmatprep.subr.mxu0 0.0
        %921 = vmatpush1.msra.mxu0 %v874
        %922 = vmatprep.subr.mxu0 0.0
        %923 = vmatpush2.msra.mxu0 0.0
        %924 = vmatprep.subr.mxu0 0.0
        %925 = vmatpush2.msra.mxu0 0.0
        %926 = vmatprep.subr.mxu0 0.0
        %927 = vmatpush2.msra.mxu0 0.0
        %928 = vmatprep.subr.mxu0 0.0
        %929 = vmatpush2.msra.mxu0 0.0
        %930 = vmatprep.subr.mxu0 0.0
        %931 = vmatpush2.msra.mxu0 0.0
        %932 = vmatprep.subr.mxu0 0.0
        %933 = vmatpush2.msra.mxu0 0.0
        %934 = vmatprep.subr.mxu0 0.0
        %935 = vmatpush2.msra.mxu0 0.0
        %936 = vmatprep.subr.mxu0 0.0
        %937 = vmatpush2.msra.mxu0 0.0
        %938 = vmatprep.subr.mxu0 0.0
        %939 = vmatpush2.msra.mxu0 0.0
        %940 = vmatprep.subr.mxu0 0.0
        %941 = vmatpush2.msra.mxu0 0.0
        %942 = vmatprep.subr.mxu0 0.0
        %943 = vmatpush2.msra.mxu0 0.0
        %944 = vmatprep.subr.mxu0 0.0
        %945 = vmatpush2.msra.mxu0 0.0
        %946 = vmatprep.subr.mxu0 0.0
        %947 = vmatpush2.msra.mxu0 0.0
        %948 = vmatprep.subr.mxu0 0.0
        %949 = vmatpush2.msra.mxu0 0.0
        %950 = vmatprep.subr.mxu0 0.0
        %951 = vmatpush2.msra.mxu0 0.0
        %952 = vmatprep.subr.mxu0 0.0
        %953 = vmatpush2.msra.mxu0 0.0
        %954 = vmatprep.mubr.f32.mxu0 0.0
        %955 = vmatmul.mubr.f32.gmra.mxu0 %v779
        %v956 = vpop.f32.mrf.mxu0
        %v957 = vadd.f32 0.0, %v956
        %v958 = vpop.f32.mrf.mxu0
        %959 = vdwg.mxu0
        %960 = vst [vmem:[%s206] sm:$0xff] %v957
        %p961 = scmp.lt.s32.totalorder %s17, 1
        %s962 = scalar_select %p961, %s17, 1
        %s963 = smul.addr %s962, 8
        %s964 = scalar_lea.vmem %s2, %s963
        // Predicated region
        $region71: #{mps_forward.1} parent=61 // pred_check
          %p965 = pneg %p92
        $region72: #{mps_forward.1} parent=61 // pred_check_branch
          %967 = sbr.rel (%p965) target = $region74
        $region73: #{mps_forward.1} parent=61 // pred_region
          _
        $region74: #{mps_forward.1} parent=61 // pred_fallthru
          _
      $region62: #{mps_forward.1} parent=5 // pred_fallthru
        _
      %p968 = scmp.le.s32.totalorder 2, %s8
      // Predicated region
      $region75: #{mps_forward.1} parent=5 // pred_check
        %p969 = pneg %p968
      $region76: #{mps_forward.1} parent=5 // pred_check_branch
        %971 = sbr.rel (%p969) target = $region78
      $region77: #{mps_forward.1} parent=5 // pred_region
        %s972 = ssub.s32 %s8, 2
        // Predicated region
        $region79: #{mps_forward.1} parent=77 // pred_check
          %p973 = pneg %p98
        $region80: #{mps_forward.1} parent=77 // pred_check_branch
          %975 = sbr.rel (%p973) target = $region82
        $region81: #{mps_forward.1} parent=77 // pred_region
          %p976 = scmp.lt.s32.totalorder %s19, 1
          %s977 = scalar_select %p976, %s19, 1
          %s978 = smul.addr %s977, 8
          %s979 = scalar_lea.vmem %s2, %s978
        $region82: #{mps_forward.1} parent=77 // pred_fallthru
          _
      $region78: #{mps_forward.1} parent=5 // pred_fallthru
        _
    $region6: #{mps_forward.1} parent=1 // loop_footer
      %s12 = sadd.s32 1, %s8
    $region7: #{mps_forward.1} parent=1 // loop_footer_branch
      %7 = sbr.rel target = $region3
    $region8: #{mps_forward.1} parent=1 // loop_exit
      _

</llo_original>
